<compile_context>
chip_gen: v7x
topology: tpu7x:2x2x1
jax: 0.10.0
libtpu: 0.0.40
codegen_flags: <defaults>
</compile_context>

<pallas_src>
import jax
import jax.numpy as jnp
from jax.experimental import pallas as pl
from jax.experimental.pallas import tpu as pltpu


def _round_up(x, m):
    return ((x + m - 1) // m) * m


def _conv_rowmm_kernel(xT_ref, w_ref, b_ref, oT_ref):
    # xT_ref: (1, w, T)  streamed input taps: tap index on sublanes, HW on lanes
    # w_ref : (d, w)     conv weight (replicated, VMEM-resident across grid steps)
    # b_ref : (d, 1)     bias (replicated, VMEM-resident)
    # oT_ref: (1, d, T)  lane-dense output tile -> full-width unmasked stores
    xT = xT_ref[...]                                   # (1, w, T)
    wm = w_ref[...]                                    # (d, w)
    d_out, t = oT_ref.shape[1], oT_ref.shape[2]
    acc = jnp.broadcast_to(b_ref[...], (d_out, t)).astype(jnp.float32)
    kw = xT_ref.shape[1]                               # static kernel width (e.g. 4)
    # K = w is tiny -> unrolled at trace time; exact f32 broadcast FMAs on the VPU.
    # TODO(synk): on v7x / large d replace with jnp.dot(wm, xT[0]) on the MXU.
    for k in range(kw):
        acc = acc + wm[:, k:k + 1] * xT[0, k:k + 1, :]   # (d,1)*(1,T) -> (d,T)
    oT_ref[...] = acc[None, :, :].astype(oT_ref.dtype)


def ltfgc_layer_1_forward(x, weight, bias, w, d, *, tm=32768):
    """Conv2d(1, d, kernel_size=(1, w), stride=1) forward pass.

    x: (N, 1, H, W_in) float32; weight: (d, 1, 1, w); bias: (d,).
    Returns (N, d, H, W_in - w + 1) in NCHW.
    """
    N, C, H, W_in = x.shape
    assert C == 1
    OW = W_in - w + 1
    assert OW >= 1
    HW = H * OW

    if OW == 1:
        # Canonical LTFGC case (W_in == w): tap matrix is a pure per-batch transpose
        # of the (d/w ~ 8x smaller-than-output) input; no im2col expansion.
        xT = x.reshape(N, H, w).transpose(0, 2, 1)                     # (N, w, H)
    else:
        # General case: build the w taps from shifted static slices (no gather).
        # TODO(synk): form taps in-kernel from one streamed block to avoid the
        # wrapper-side w-fold expansion; canonical LTFGC only hits OW == 1.
        x2d = x[:, 0, :, :]                                            # (N, H, W_in)
        taps = jnp.stack([x2d[:, :, k:k + OW] for k in range(w)], axis=1)  # (N, w, H, OW)
        xT = taps.reshape(N, w, HW)

    # --- tile sizing ---------------------------------------------------------
    HW128 = _round_up(HW, 128)
    # Cap the lane tile so double-buffered in+out tiles (~2*(8+d)*4*T bytes; w pads
    # to 8 sublanes, everything f32) stay well inside v7x's 64 MiB VMEM.
    bytes_per_col = 2 * (8 + d) * 4
    t_cap = max(128, ((40 * 1024 * 1024) // bytes_per_col) // 128 * 128)
    t_hw = _round_up(max(128, min(tm, t_cap, HW128)), 128)
    n_tiles = pl.cdiv(HW128, t_hw)
    # v7x megacore: guarantee >= 2 parallel grid steps when the data allows it.
    if N * n_tiles < 2 and HW128 >= 256:
        n_tiles = 2
    # Re-balance the tile so padding waste stays below 128 columns per tile
    # (instead of padding HW up to a multiple of a large tm).
    t_hw = _round_up(pl.cdiv(HW128, n_tiles), 128)
    HW_grid = n_tiles * t_hw

    if HW_grid != HW:
        xT = jnp.pad(xT, ((0, 0), (0, 0), (0, HW_grid - HW)))

    wmat = weight.reshape(d, w).astype(x.dtype)
    bvec = bias.reshape(d, 1).astype(x.dtype)

    out_t = pl.pallas_call(
        _conv_rowmm_kernel,
        out_shape=jax.ShapeDtypeStruct((N, d, HW_grid), x.dtype),
        grid_spec=pltpu.PrefetchScalarGridSpec(
            num_scalar_prefetch=0,
            grid=(N, n_tiles),
            in_specs=[
                pl.BlockSpec((1, w, t_hw), lambda n, i: (n, 0, i)),   # streamed taps
                pl.BlockSpec((d, w), lambda n, i: (0, 0)),            # resident weight
                pl.BlockSpec((d, 1), lambda n, i: (0, 0)),            # resident bias
            ],
            out_specs=pl.BlockSpec((1, d, t_hw), lambda n, i: (n, 0, i)),
        ),
        compiler_params=pltpu.CompilerParams(
            dimension_semantics=("parallel", "parallel"),
            vmem_limit_bytes=48 * 1024 * 1024,   # sized off v7x's 64 MiB VMEM
        ),
    )(xT, wmat, bvec)

    # (N, d, HW_grid) -> slice pad -> (N, d, H, OW): pure reshape, no big transpose.
    return out_t[:, :, :HW].reshape(N, d, H, OW)


if __name__ == "__main__":
    key = jax.random.PRNGKey(0)
    kx1, kx2, kw_, kb_ = jax.random.split(key, 4)

    w, d = 4, 32
    weight = jax.random.normal(kw_, (d, 1, 1, w), dtype=jnp.float32) * 0.1
    bias = jax.random.normal(kb_, (d,), dtype=jnp.float32) * 0.01

    def ref_conv(xx):
        # nn.Conv2d forward = cross-correlation + bias.
        y = jax.lax.conv_general_dilated(
            xx, weight, window_strides=(1, 1), padding="VALID",
            dimension_numbers=("NCHW", "OIHW", "NCHW"),
            precision=jax.lax.Precision.HIGHEST)
        return y + bias.reshape(1, d, 1, 1)

    # Test 1: canonical LTFGC input (W_in == w -> OW == 1), reshape path, grid (2, 1).
    N1, H1 = 2, 16
    x1 = jax.random.normal(kx1, (N1, 1, H1, w), dtype=jnp.float32)
    out1 = jax.block_until_ready(ltfgc_layer_1_forward(x1, weight, bias, w, d))
    ref1 = ref_conv(x1)
    assert out1.shape == (N1, d, H1, 1)
    assert jnp.allclose(out1, ref1, atol=1e-4, rtol=1e-4)

    # Test 2: OW > 1 general path with a small tile to exercise the 2-D grid
    # (N=2, HW=160 -> grid (2, 2) at tm=128, including padded edge tiles).
    N2, H2, W2 = 2, 20, 11
    x2 = jax.random.normal(kx2, (N2, 1, H2, W2), dtype=jnp.float32)
    out2 = jax.block_until_ready(
        ltfgc_layer_1_forward(x2, weight, bias, w, d, tm=128))
    ref2 = ref_conv(x2)
    assert out2.shape == (N2, d, H2, W2 - w + 1)
    assert jnp.allclose(out2, ref2, atol=1e-4, rtol=1e-4)

    print("KERNEL_OK")
</pallas_src>

<mosaic_0001>
module attributes {stable_mosaic.version = 11 : i64} {
  func.func @_conv_rowmm_kernel(%arg0: i32, %arg1: i32, %arg2: memref<1x4x128xf32, #tpu.memory_space<vmem>>, %arg3: memref<32x4xf32, #tpu.memory_space<vmem>>, %arg4: memref<32x1xf32, #tpu.memory_space<vmem>>, %arg5: memref<1x32x128xf32, #tpu.memory_space<vmem>>) attributes {dimension_semantics = [#tpu.dimension_semantics<parallel>, #tpu.dimension_semantics<parallel>], iteration_bounds = array<i64: 2, 1>, scalar_prefetch = 0 : i64, scratch_operands = 0 : i64, tpu.core_type = #tpu.core_type<tc>, window_params = [{transform_indices = @transform_0, window_bounds = array<i64: 1, 4, 128>}, {pipeline_mode = #tpu.pipeline_mode<synchronous>, transform_indices = @transform_1, window_bounds = array<i64: 32, 4>}, {pipeline_mode = #tpu.pipeline_mode<synchronous>, transform_indices = @transform_2, window_bounds = array<i64: 32, 1>}, {transform_indices = @transform_3, window_bounds = array<i64: 1, 32, 128>}]} {
    %c0 = arith.constant 0 : index
    %c0_0 = arith.constant 0 : index
    %c0_1 = arith.constant 0 : index
    %0 = vector.load %arg2[%c0, %c0_0, %c0_1] : memref<1x4x128xf32, #tpu.memory_space<vmem>>, vector<1x4x128xf32>
    %c0_2 = arith.constant 0 : index
    %c0_3 = arith.constant 0 : index
    %1 = vector.load %arg3[%c0_2, %c0_3] : memref<32x4xf32, #tpu.memory_space<vmem>>, vector<32x4xf32>
    %c0_4 = arith.constant 0 : index
    %c0_5 = arith.constant 0 : index
    %2 = vector.load %arg4[%c0_4, %c0_5] : memref<32x1xf32, #tpu.memory_space<vmem>>, vector<32x1xf32>
    %3 = vector.shape_cast %2 : vector<32x1xf32> to vector<32x1xf32>
    %4 = vector.broadcast %3 : vector<32x1xf32> to vector<32x128xf32>
    %5 = vector.extract_strided_slice %1 {offsets = [0, 0], sizes = [32, 1], strides = [1, 1]} : vector<32x4xf32> to vector<32x1xf32>
    %6 = vector.extract_strided_slice %0 {offsets = [0, 0, 0], sizes = [1, 1, 128], strides = [1, 1, 1]} : vector<1x4x128xf32> to vector<1x1x128xf32>
    %7 = vector.shape_cast %6 : vector<1x1x128xf32> to vector<1x128xf32>
    %8 = vector.broadcast %5 : vector<32x1xf32> to vector<32x128xf32>
    %9 = vector.broadcast %7 : vector<1x128xf32> to vector<32x128xf32>
    %10 = arith.mulf %8, %9 : vector<32x128xf32>
    %11 = arith.addf %4, %10 : vector<32x128xf32>
    %12 = vector.extract_strided_slice %1 {offsets = [0, 1], sizes = [32, 1], strides = [1, 1]} : vector<32x4xf32> to vector<32x1xf32>
    %13 = vector.extract_strided_slice %0 {offsets = [0, 1, 0], sizes = [1, 1, 128], strides = [1, 1, 1]} : vector<1x4x128xf32> to vector<1x1x128xf32>
    %14 = vector.shape_cast %13 : vector<1x1x128xf32> to vector<1x128xf32>
    %15 = vector.broadcast %12 : vector<32x1xf32> to vector<32x128xf32>
    %16 = vector.broadcast %14 : vector<1x128xf32> to vector<32x128xf32>
    %17 = arith.mulf %15, %16 : vector<32x128xf32>
    %18 = arith.addf %11, %17 : vector<32x128xf32>
    %19 = vector.extract_strided_slice %1 {offsets = [0, 2], sizes = [32, 1], strides = [1, 1]} : vector<32x4xf32> to vector<32x1xf32>
    %20 = vector.extract_strided_slice %0 {offsets = [0, 2, 0], sizes = [1, 1, 128], strides = [1, 1, 1]} : vector<1x4x128xf32> to vector<1x1x128xf32>
    %21 = vector.shape_cast %20 : vector<1x1x128xf32> to vector<1x128xf32>
    %22 = vector.broadcast %19 : vector<32x1xf32> to vector<32x128xf32>
    %23 = vector.broadcast %21 : vector<1x128xf32> to vector<32x128xf32>
    %24 = arith.mulf %22, %23 : vector<32x128xf32>
    %25 = arith.addf %18, %24 : vector<32x128xf32>
    %26 = vector.extract_strided_slice %1 {offsets = [0, 3], sizes = [32, 1], strides = [1, 1]} : vector<32x4xf32> to vector<32x1xf32>
    %27 = vector.extract_strided_slice %0 {offsets = [0, 3, 0], sizes = [1, 1, 128], strides = [1, 1, 1]} : vector<1x4x128xf32> to vector<1x1x128xf32>
    %28 = vector.shape_cast %27 : vector<1x1x128xf32> to vector<1x128xf32>
    %29 = vector.broadcast %26 : vector<32x1xf32> to vector<32x128xf32>
    %30 = vector.broadcast %28 : vector<1x128xf32> to vector<32x128xf32>
    %31 = arith.mulf %29, %30 : vector<32x128xf32>
    %32 = arith.addf %25, %31 : vector<32x128xf32>
    %33 = vector.shape_cast %32 : vector<32x128xf32> to vector<1x32x128xf32>
    %c0_6 = arith.constant 0 : index
    %c0_7 = arith.constant 0 : index
    %c0_8 = arith.constant 0 : index
    %34 = vector.load %arg5[%c0_6, %c0_7, %c0_8] : memref<1x32x128xf32, #tpu.memory_space<vmem>>, vector<1x32x128xf32>
    tpu.vector_store %arg5[%c0_6, %c0_7, %c0_8], %33 {strides = array<i32>} : memref<1x32x128xf32, #tpu.memory_space<vmem>>, vector<1x32x128xf32>,
    return
  }
  func.func @transform_0(%arg0: i32, %arg1: i32) -> (i32, i32, i32) {
    %c0_i32 = arith.constant 0 : i32
    %c0_i32_0 = arith.constant 0 : i32
    return %arg0, %c0_i32, %arg1 : i32, i32, i32
  }
  func.func @transform_1(%arg0: i32, %arg1: i32) -> (i32, i32) {
    %c0_i32 = arith.constant 0 : i32
    %c0_i32_0 = arith.constant 0 : i32
    %c0_i32_1 = arith.constant 0 : i32
    return %c0_i32, %c0_i32_0 : i32, i32
  }
  func.func @transform_2(%arg0: i32, %arg1: i32) -> (i32, i32) {
    %c0_i32 = arith.constant 0 : i32
    %c0_i32_0 = arith.constant 0 : i32
    %c0_i32_1 = arith.constant 0 : i32
    return %c0_i32, %c0_i32_0 : i32, i32
  }
  func.func @transform_3(%arg0: i32, %arg1: i32) -> (i32, i32, i32) {
    %c0_i32 = arith.constant 0 : i32
    %c0_i32_0 = arith.constant 0 : i32
    return %arg0, %c0_i32, %arg1 : i32, i32, i32
  }
}

</mosaic_0001>

<llo_original>
// kernel: tpu_custom_call.1
$region0: #{tpu_custom_call.1}
  #allocation0 [shape = 'u32[]', space=smem, size = 0x4, offset = 0x4, fixed_abs, tag = 'smem constant byte address 0x4 - core index']
  #allocation1 [shape = 'u32[144,128]{1,0:T(1,128)}', space=vmem, size = 0x12000, scoped, tag = 'internal scratch']
  %s0 = inlined_call_operand.vmem [shape: f32[2,4,128], index: 0, kind: input, shape index: {}]
  %s1 = inlined_call_operand.vmem [shape: f32[32,4], index: 1, kind: input, shape index: {}]
  %s2 = inlined_call_operand.vmem [shape: f32[32,1], index: 2, kind: input, shape index: {}]
  %s3 = inlined_call_operand.hbm [shape: f32[2,32,128], index: 3, kind: output, shape index: {}]
  %s4 = sld [smem:[#allocation0]]
  $region45: #{tpu_custom_call.1} parent=0
    _
  %s6 = ssub.s32 1, %s4
  %s7 = scalar_select 0, %s6, %s4
  $region1: #{tpu_custom_call.1} parent=0
    #allocation2 [shape = 'u8[32768]{0}', space=vmem, size = 0x8000, scoped, tag = 'output window, operand 0']
    #allocation3 [shape = 's32[2]{0}', space=sflag, size = 0x8, scoped, tag = 'scoped memory for tpu_custom_call.1']
    %8 = vsyncpa [#allocation3], 0
    %s9 = scalar_lea.sflag [#allocation3], 1
    %10 = vsyncpa %s9, 0
    loop: start=0, step=1, limit=4
    $region2: #{tpu_custom_call.1} parent=1 // loop_pre_header
      _
    $region3: #{tpu_custom_call.1} parent=1 // loop_header
      %s12 = sphi 0, %s16
      %p13 = scmp.ge.s32.totalorder %s12, 4
      %s19 = sphi 0, %s31
      %s20 = sphi 0, %s27
      %s21 = sphi 0, %s19
      %s22 = sphi 0, %s20
      %s23 = sphi 0, %s21
      %s24 = sphi 0, %s22
      %s36 = sphi 0, %s38
      %s39 = sphi 0, %s36
      %s40 = sphi 0, %s39
      %s56 = sphi 0, %s40
      %s60 = sphi 0, %s60
      %s62 = sphi 0, %s60
      %s63 = sphi 0, %s62
      %s77 = sphi 0, %s63
      %s81 = sphi 0, %s81
      %s83 = sphi 0, %s81
      %s84 = sphi 0, %s83
      %s98 = sphi 0, %s84
      %s106 = sphi 0, %s108
      %s109 = sphi 0, %s106
      %s110 = sphi 0, %s109
      %s126 = sphi 0, %s110
    $region4: #{tpu_custom_call.1} parent=1 // loop_header_branch
      %15 = sbr.rel (%p13) target = $region8
    $region5: #{tpu_custom_call.1} parent=1 // loop_body
      %s17 = ssub.s32 %s12, 1
      %s18 = ssub.s32 %s12, 2
      %s25 = sadd.s32 1, %s20
      %p26 = scmp.ge.s32.totalorder %s25, 1
      %s27 = scalar_select %p26, 0, %s25
      %s28 = sadd.s32 1, %s19
      %s29 = scalar_select %p26, %s28, %s19
      %p30 = scmp.ge.s32.totalorder %s29, 2
      %s31 = scalar_select %p30, 0, %s29
      %s32 = ssub.s32 %s19, %s31
      %s33 = ssub.s32 %s20, %s27
      %s34 = sor.u32 %s32, %s33
      %p35 = scmp.eq.s32.totalorder %s34, 0
      %s37 = sadd.s32 %s36, 1
      %s38 = scalar_select %p35, %s36, %s37
      %p41 = pneg %p35
      %p42 = scmp.eq.s32.totalorder %s12, 1
      %p43 = por %p41, %p42
      %p44 = scmp.ne.s32.totalorder %s36, %s39
      %p45 = scmp.eq.s32.totalorder %s12, 0
      %p46 = por %p44, %p45
      %p47 = scmp.ne.s32.totalorder %s36, %s39
      %p48 = scmp.eq.s32.totalorder %s17, 1
      %p49 = por %p47, %p48
      %p50 = scmp.ne.s32.totalorder %s39, %s40
      %p51 = scmp.eq.s32.totalorder %s17, 0
      %p52 = por %p50, %p51
      %p53 = scmp.ne.s32.totalorder %s39, %s40
      %p54 = scmp.eq.s32.totalorder %s18, 1
      %p55 = por %p53, %p54
      %p57 = scmp.ne.s32.totalorder %s40, %s56
      %p58 = scmp.eq.s32.totalorder %s18, 0
      %p59 = por %p57, %p58
      %s61 = sadd.s32 %s60, 1
      %p64 = scmp.eq.s32.totalorder %s12, 1
      %p65 = scmp.ne.s32.totalorder %s60, %s62
      %p66 = scmp.eq.s32.totalorder %s12, 0
      %p67 = por %p65, %p66
      %p68 = scmp.ne.s32.totalorder %s60, %s62
      %p69 = scmp.eq.s32.totalorder %s17, 1
      %p70 = por %p68, %p69
      %p71 = scmp.ne.s32.totalorder %s62, %s63
      %p72 = scmp.eq.s32.totalorder %s17, 0
      %p73 = por %p71, %p72
      %p74 = scmp.ne.s32.totalorder %s62, %s63
      %p75 = scmp.eq.s32.totalorder %s18, 1
      %p76 = por %p74, %p75
      %p78 = scmp.ne.s32.totalorder %s63, %s77
      %p79 = scmp.eq.s32.totalorder %s18, 0
      %p80 = por %p78, %p79
      %s82 = sadd.s32 %s81, 1
      %p85 = scmp.eq.s32.totalorder %s12, 1
      %p86 = scmp.ne.s32.totalorder %s81, %s83
      %p87 = scmp.eq.s32.totalorder %s12, 0
      %p88 = por %p86, %p87
      %p89 = scmp.ne.s32.totalorder %s81, %s83
      %p90 = scmp.eq.s32.totalorder %s17, 1
      %p91 = por %p89, %p90
      %p92 = scmp.ne.s32.totalorder %s83, %s84
      %p93 = scmp.eq.s32.totalorder %s17, 0
      %p94 = por %p92, %p93
      %p95 = scmp.ne.s32.totalorder %s83, %s84
      %p96 = scmp.eq.s32.totalorder %s18, 1
      %p97 = por %p95, %p96
      %p99 = scmp.ne.s32.totalorder %s84, %s98
      %p100 = scmp.eq.s32.totalorder %s18, 0
      %p101 = por %p99, %p100
      %s102 = ssub.s32 %s19, %s31
      %s103 = ssub.s32 %s20, %s27
      %s104 = sor.u32 %s102, %s103
      %p105 = scmp.eq.s32.totalorder %s104, 0
      %s107 = sadd.s32 %s106, 1
      %s108 = scalar_select %p105, %s106, %s107
      %p111 = pneg %p105
      %p112 = scmp.eq.s32.totalorder %s12, 1
      %p113 = por %p111, %p112
      %p114 = scmp.ne.s32.totalorder %s106, %s109
      %p115 = scmp.eq.s32.totalorder %s12, 0
      %p116 = por %p114, %p115
      %p117 = scmp.ne.s32.totalorder %s106, %s109
      %p118 = scmp.eq.s32.totalorder %s17, 1
      %p119 = por %p117, %p118
      %p120 = scmp.ne.s32.totalorder %s109, %s110
      %p121 = scmp.eq.s32.totalorder %s17, 0
      %p122 = por %p120, %p121
      %p123 = scmp.ne.s32.totalorder %s109, %s110
      %p124 = scmp.eq.s32.totalorder %s18, 1
      %p125 = por %p123, %p124
      %p127 = scmp.ne.s32.totalorder %s110, %s126
      %p128 = scmp.eq.s32.totalorder %s18, 0
      %p129 = por %p127, %p128
      %p130 = scmp.le.s32.totalorder 1, %s12
      %p131 = scmp.lt.s32.totalorder %s12, 3
      %p132 = pnand %p130, %p131
      %p133 = pneg %p132
      // Predicated region
      $region9: #{tpu_custom_call.1} parent=5 // pred_check
        _
      $region10: #{tpu_custom_call.1} parent=5 // pred_check_branch
        %135 = sbr.rel (%p132) target = $region12
      $region11: #{tpu_custom_call.1} parent=5 // pred_region
        %s136 = ssub.s32 %s12, 1
        // Predicated region
        $region13: #{tpu_custom_call.1} parent=11 // pred_check
          %p137 = pneg %p73
        $region14: #{tpu_custom_call.1} parent=11 // pred_check_branch
          %139 = sbr.rel (%p137) target = $region16
        $region15: #{tpu_custom_call.1} parent=11 // pred_region
          _
        $region16: #{tpu_custom_call.1} parent=11 // pred_fallthru
          _
        // Predicated region
        $region17: #{tpu_custom_call.1} parent=11 // pred_check
          %p140 = pneg %p94
        $region18: #{tpu_custom_call.1} parent=11 // pred_check_branch
          %142 = sbr.rel (%p140) target = $region20
        $region19: #{tpu_custom_call.1} parent=11 // pred_region
          _
        $region20: #{tpu_custom_call.1} parent=11 // pred_fallthru
          _
      $region12: #{tpu_custom_call.1} parent=5 // pred_fallthru
        _
      %p143 = scmp.lt.s32.totalorder %s12, 2
      // Predicated region
      $region21: #{tpu_custom_call.1} parent=5 // pred_check
        %p144 = pneg %p143
      $region22: #{tpu_custom_call.1} parent=5 // pred_check_branch
        %146 = sbr.rel (%p144) target = $region24
      $region23: #{tpu_custom_call.1} parent=5 // pred_region
        // Predicated region
        $region25: #{tpu_custom_call.1} parent=23 // pred_check
          %p147 = pneg %p46
        $region26: #{tpu_custom_call.1} parent=23 // pred_check_branch
          %149 = sbr.rel (%p147) target = $region28
        $region27: #{tpu_custom_call.1} parent=23 // pred_region
          %p150 = scmp.lt.s32.totalorder %s19, 1
          %s151 = scalar_select %p150, %s19, 1
          %p152 = scmp.lt.s32.totalorder %s20, 0
          %s153 = scalar_select %p152, %s20, 0
          %s154 = sadd.s32 %s153, %s151
          %s155 = smul.addr %s154, 4
          %s156 = scalar_lea.vmem %s0, %s155
        $region28: #{tpu_custom_call.1} parent=23 // pred_fallthru
          _
      $region24: #{tpu_custom_call.1} parent=5 // pred_fallthru
        _
      %p157 = scmp.le.s32.totalorder 1, %s12
      %p158 = scmp.lt.s32.totalorder %s12, 3
      %p159 = pnand %p157, %p158
      %p160 = pneg %p159
      // Predicated region
      $region29: #{tpu_custom_call.1} parent=5 // pred_check
        _
      $region30: #{tpu_custom_call.1} parent=5 // pred_check_branch
        %162 = sbr.rel (%p159) target = $region32
      $region31: #{tpu_custom_call.1} parent=5 // pred_region
        %s163 = ssub.s32 %s12, 1
        %p164 = scmp.lt.s32.totalorder %s21, 1
        %s165 = scalar_select %p164, %s21, 1
        %p166 = scmp.lt.s32.totalorder %s22, 0
        %s167 = scalar_select %p166, %s22, 0
        %s168 = sadd.s32 %s167, %s165
        %s169 = smul.addr %s168, 4
        %s170 = scalar_lea.vmem %s0, %s169
        %p171 = pneg %p52
        %p172 = pneg %p49
        %p173 = pneg %p73
        %p174 = pneg %p70
        %p175 = pneg %p94
        %p176 = pneg %p91
        %p177 = pneg %p122
        %p178 = pneg %p119
        %s179 = sand.u32 %s109, 1
        %s180 = scalar_lea.sflag [#allocation3], %s179
        %s181 = sand.u32 %s109, 1
        %s182 = smul.addr %s181, 32
        %s183 = scalar_lea.vmem [#allocation2], %s182
        %p184 = scmp.lt.s32.totalorder %s21, 1
        %s185 = scalar_select %p184, %s21, 1
        %p186 = scmp.lt.s32.totalorder %s22, 0
        %s187 = scalar_select %p186, %s22, 0
        %s188 = sadd.s32 %s187, %s185
        %s189 = smul.addr %s188, 4
        %s190 = scalar_lea.vmem %s0, %s189
        %v191 = vld [vmem:[%s190] sm:$0xf]
        %v192 = vld [vmem:[%s1] sm:$0xff]
        %v193 = vld [vmem:[%s1 + $0x8] sm:$0xff]
        %v194 = vld [vmem:[%s1 + $0x10] sm:$0xff]
        %v195 = vld [vmem:[%s1 + $0x18] sm:$0xff]
        %v196 = vld [vmem:[%s2] sm:$0xff]
        %v197 = vld [vmem:[%s2 + $0x8] sm:$0xff]
        %v198 = vld [vmem:[%s2 + $0x10] sm:$0xff]
        %v199 = vld [vmem:[%s2 + $0x18] sm:$0xff]
        %201 = vset.pattern.permute.xlu0 0
        %202 = vperm.xlu0 %201, %v196
        %v203 = vpop.permute.xlu0 %202
        %206 = vset.pattern.permute.xlu0 0
        %207 = vperm.xlu0 %206, %v197
        %v208 = vpop.permute.xlu0 %207
        %211 = vset.pattern.permute.xlu0 0
        %212 = vperm.xlu0 %211, %v198
        %v213 = vpop.permute.xlu0 %212
        %216 = vset.pattern.permute.xlu0 0
        %217 = vperm.xlu0 %216, %v199
        %v218 = vpop.permute.xlu0 %217
        %221 = vset.pattern.permute.xlu0 0
        %222 = vperm.xlu0 %221, %v192
        %v223 = vpop.permute.xlu0 %222
        %226 = vset.pattern.permute.xlu0 0
        %227 = vperm.xlu0 %226, %v193
        %v228 = vpop.permute.xlu0 %227
        %231 = vset.pattern.permute.xlu0 0
        %232 = vperm.xlu0 %231, %v194
        %v233 = vpop.permute.xlu0 %232
        %236 = vset.pattern.permute.xlu0 0
        %237 = vperm.xlu0 %236, %v195
        %v238 = vpop.permute.xlu0 %237
        %v240 = vlaneseq
        %v241 = vshrl.u32 %v240, 7
        %v242 = vsub.s32 0, %v241
        %v243 = vrot.slane %v191, %v242
        %v244 = vmul.f32 %v223, %v243
        %v245 = vmul.f32 %v228, %v243
        %v246 = vmul.f32 %v233, %v243
        %v247 = vmul.f32 %v238, %v243
        %v248 = vadd.f32 %v203, %v244
        %v249 = vadd.f32 %v208, %v245
        %v250 = vadd.f32 %v213, %v246
        %v251 = vadd.f32 %v218, %v247
        %252 = vset.pattern.permute.xlu0 1
        %253 = vperm.xlu0 %252, %v192
        %v254 = vpop.permute.xlu0 %253
        %256 = vset.pattern.permute.xlu0 1
        %257 = vperm.xlu0 %256, %v193
        %v258 = vpop.permute.xlu0 %257
        %260 = vset.pattern.permute.xlu0 1
        %261 = vperm.xlu0 %260, %v194
        %v262 = vpop.permute.xlu0 %261
        %264 = vset.pattern.permute.xlu0 1
        %265 = vperm.xlu0 %264, %v195
        %v266 = vpop.permute.xlu0 %265
        %v268 = vlaneseq
        %v269 = vshrl.u32 %v268, 7
        %v270 = vsub.s32 1, %v269
        %v271 = vrot.slane %v191, %v270
        %v272 = vmul.f32 %v254, %v271
        %v273 = vmul.f32 %v258, %v271
        %v274 = vmul.f32 %v262, %v271
        %v275 = vmul.f32 %v266, %v271
        %v276 = vadd.f32 %v248, %v272
        %v277 = vadd.f32 %v249, %v273
        %v278 = vadd.f32 %v250, %v274
        %v279 = vadd.f32 %v251, %v275
        %280 = vset.pattern.permute.xlu0 2
        %281 = vperm.xlu0 %280, %v192
        %v282 = vpop.permute.xlu0 %281
        %284 = vset.pattern.permute.xlu0 2
        %285 = vperm.xlu0 %284, %v193
        %v286 = vpop.permute.xlu0 %285
        %288 = vset.pattern.permute.xlu0 2
        %289 = vperm.xlu0 %288, %v194
        %v290 = vpop.permute.xlu0 %289
        %292 = vset.pattern.permute.xlu0 2
        %293 = vperm.xlu0 %292, %v195
        %v294 = vpop.permute.xlu0 %293
        %v296 = vlaneseq
        %v297 = vshrl.u32 %v296, 7
        %v298 = vsub.s32 2, %v297
        %v299 = vrot.slane %v191, %v298
        %v300 = vmul.f32 %v282, %v299
        %v301 = vmul.f32 %v286, %v299
        %v302 = vmul.f32 %v290, %v299
        %v303 = vmul.f32 %v294, %v299
        %v304 = vadd.f32 %v276, %v300
        %v305 = vadd.f32 %v277, %v301
        %v306 = vadd.f32 %v278, %v302
        %v307 = vadd.f32 %v279, %v303
        %308 = vset.pattern.permute.xlu0 3
        %309 = vperm.xlu0 %308, %v192
        %v310 = vpop.permute.xlu0 %309
        %312 = vset.pattern.permute.xlu0 3
        %313 = vperm.xlu0 %312, %v193
        %v314 = vpop.permute.xlu0 %313
        %316 = vset.pattern.permute.xlu0 3
        %317 = vperm.xlu0 %316, %v194
        %v318 = vpop.permute.xlu0 %317
        %320 = vset.pattern.permute.xlu0 3
        %321 = vperm.xlu0 %320, %v195
        %v322 = vpop.permute.xlu0 %321
        %v324 = vlaneseq
        %v325 = vshrl.u32 %v324, 7
        %v326 = vsub.s32 3, %v325
        %v327 = vrot.slane %v191, %v326
        %v328 = vmul.f32 %v310, %v327
        %v329 = vmul.f32 %v314, %v327
        %v330 = vmul.f32 %v318, %v327
        %v331 = vmul.f32 %v322, %v327
        %v332 = vadd.f32 %v304, %v328
        %v333 = vadd.f32 %v305, %v329
        %v334 = vadd.f32 %v306, %v330
        %v335 = vadd.f32 %v307, %v331
        %336 = vst [vmem:[%s183] sm:$0xff] %v332
        %337 = vst [vmem:[%s183 + $0x8] sm:$0xff] %v333
        %338 = vst [vmem:[%s183 + $0x10] sm:$0xff] %v334
        %339 = vst [vmem:[%s183 + $0x18] sm:$0xff] %v335
        %s340 = sand.u32 %s109, 1
        %s341 = scalar_lea.sflag [#allocation3], %s340
        %s342 = sand.u32 %s109, 1
        %s343 = smul.addr %s342, 32
        %s344 = scalar_lea.vmem [#allocation2], %s343
        // Predicated region
        $region33: #{tpu_custom_call.1} parent=31 // pred_check
          %p345 = pneg %p119
        $region34: #{tpu_custom_call.1} parent=31 // pred_check_branch
          %347 = sbr.rel (%p345) target = $region36
        $region35: #{tpu_custom_call.1} parent=31 // pred_region
          %s349 = ssub.s32 512, 512
          %350 = vsyncadd %s341, %s349
          %s351 = smul.addr %s21, 4
          %s352 = sadd.s32 %s22, %s351
          %s353 = smul.addr %s352, 128
          %s354 = scalar_lea.hbm %s3, %s353
          %s355 = sshll.u32 %s344, 4
          %s356 = int_to_ptr.vmem [resolvable:$true] %s355
          %361 = dma.vmem_to_hbm [thread:$0]  %s356, 512, %s354, %s341, 128, 128, 8
        $region36: #{tpu_custom_call.1} parent=31 // pred_fallthru
          _
      $region32: #{tpu_custom_call.1} parent=5 // pred_fallthru
        _
      %p362 = scmp.le.s32.totalorder 2, %s12
      // Predicated region
      $region37: #{tpu_custom_call.1} parent=5 // pred_check
        %p363 = pneg %p362
      $region38: #{tpu_custom_call.1} parent=5 // pred_check_branch
        %365 = sbr.rel (%p363) target = $region40
      $region39: #{tpu_custom_call.1} parent=5 // pred_region
        %s366 = ssub.s32 %s12, 2
        // Predicated region
        $region41: #{tpu_custom_call.1} parent=39 // pred_check
          %p367 = pneg %p125
        $region42: #{tpu_custom_call.1} parent=39 // pred_check_branch
          %369 = sbr.rel (%p367) target = $region44
        $region43: #{tpu_custom_call.1} parent=39 // pred_region
          %s370 = sand.u32 %s110, 1
          %s371 = scalar_lea.sflag [#allocation3], %s370
          %s372 = sand.u32 %s110, 1
          %s373 = smul.addr %s372, 32
          %s374 = scalar_lea.vmem [#allocation2], %s373
          %375 = dma.done %s371, 512
        $region44: #{tpu_custom_call.1} parent=39 // pred_fallthru
          _
      $region40: #{tpu_custom_call.1} parent=5 // pred_fallthru
        _
    $region6: #{tpu_custom_call.1} parent=1 // loop_footer
      %s16 = sadd.s32 1, %s12
    $region7: #{tpu_custom_call.1} parent=1 // loop_footer_branch
      %11 = sbr.rel target = $region3
    $region8: #{tpu_custom_call.1} parent=1 // loop_exit
      _
    %376 = vsyncpa [#allocation3], 1
    %s377 = scalar_lea.sflag [#allocation3], 1
    %378 = vsyncpa %s377, 1

</llo_original>
